<compile_context>
chip_gen: v7x
topology: tpu7x:2x2x1
jax: 0.10.0
libtpu: 0.0.40
codegen_flags: <defaults>
</compile_context>

<pallas_src>
import functools
import math

import jax
import jax.numpy as jnp
from jax import lax
from jax.experimental import pallas as pl
from jax.experimental.pallas import tpu as pltpu


# ----------------------------- kernels -----------------------------

def logreg_rows_kernel(x_ref, w_ref, b_ref, o_ref):
    # x_ref: (bn, D) native dtype; w_ref: (1, D); b_ref: (1, 1) f32 in SMEM; o_ref: (1, bn) f32.
    # NT matmul on the MXU (contract over D) -> lane-dense (1, bn) with f32 accumulation.
    # NOTE: in a partial (overhanging) last block the padded rows of x_ref hold garbage; each
    # output lane depends only on its own row, and the garbage lanes are clipped at write-back.
    z = lax.dot_general(
        w_ref[...],
        x_ref[...],
        dimension_numbers=(((1,), (1,)), ((), ())),
        preferred_element_type=jnp.float32,
    )
    o_ref[...] = jax.nn.sigmoid(z + b_ref[0, 0]).astype(o_ref.dtype)


def logreg_packed_kernel(x_ref, w_ref, b_ref, o_ref):
    # x_ref: (bn, k*D) lane-dense view of k original rows per VMEM row;
    # w_ref: (k*D, k) block-diagonal weight; o_ref: (bn, k) f32.
    z = jnp.dot(x_ref[...], w_ref[...], preferred_element_type=jnp.float32)
    o_ref[...] = jax.nn.sigmoid(z + b_ref[0, 0]).astype(o_ref.dtype)


# ----------------------------- sizing helpers -----------------------------

def _round_up(v, m):
    return (v + m - 1) // m * m


def _vmem_capacity_bytes():
    # Generation-aware physical VMEM (64 MiB/TC on v7x, 128 MiB on v5e/v6e).
    try:
        cap = getattr(pltpu.get_tpu_info(), "vmem_capacity_bytes", None)
        if cap:
            return int(cap)
    except Exception:
        pass
    return 64 * 1024 * 1024  # conservative fallback (v7x per-core)


def _pack_factor(d):
    # Smallest k with (k * d) % 128 == 0 (lane-dense row width).
    return 128 // math.gcd(d, 128)


def _choose_block_rows(rows, row_elems, itemsize, granule, resident_bytes=0):
    """Pick the batch-tile row count for the streamed x view.

    Largest tile such that the double-buffered x tile stays within ~35% of physical VMEM
    (minus the resident weight's double-buffer footprint), rounded to `granule` rows, and
    capped so there are >=2 grid blocks when rows >= 256 (both v7x TensorCores get work).
    Returns (block_rows, num_blocks).
    """
    vmem_phys = _vmem_capacity_bytes()
    dbuf_budget = max((35 * vmem_phys) // 100 - resident_bytes, 1 << 20)
    padded_row_bytes = max(_round_up(row_elems, 128), 128) * itemsize  # VMEM lane padding
    cap = max(granule, (dbuf_budget // (2 * padded_row_bytes)) // granule * granule)
    if rows < 256 and rows <= cap:
        return rows, 1                      # single full-extent block (any size is legal)
    half = _round_up(pl.cdiv(rows, 2), granule)   # >=2 blocks -> "parallel" axis can shard
    bn = max(granule, min(cap, half))
    return bn, pl.cdiv(rows, bn)


# ----------------------------- wrapper -----------------------------

@functools.partial(jax.jit, static_argnames=("block_rows",))
def logistic_regression(x, w, b, *, block_rows=None):
    """sigmoid(x @ w.T + b). x: (N, D), w: (1, D) (nn.Linear layout), b: (1,) -> (N, 1) f32."""
    n, d = x.shape
    itemsize = x.dtype.itemsize
    # TODO(synk): for bf16/int8 activations, keeping f32 weights (mixed-precision dot) would match
    # the f32 torch reference more closely than this cast; f32 accumulation limits the drift.
    w_in = w.astype(x.dtype)
    b_in = b.reshape(1, 1).astype(jnp.float32)          # scalar bias -> SMEM

    vmem_phys = _vmem_capacity_bytes()
    compiler_params = pltpu.CompilerParams(
        dimension_semantics=("parallel",),               # batch blocks shard across v7x's 2 TCs
        vmem_limit_bytes=min((65 * vmem_phys) // 100, 100 * 1024 * 1024),
    )

    k = _pack_factor(d)
    use_packed = (k > 1) and (n % k == 0) and (n >= k)

    if use_packed:
        # Lane-dense repack: (N, D) -> (N/k, k*D) is a free row-major view; block-diagonal
        # weight (k*D, k) keeps per-row dot semantics; (N/k, k) output flattens back to (N, 1).
        rows = n // k
        x_view = x.reshape(rows, k * d)
        w_bd = jnp.kron(jnp.eye(k, dtype=w_in.dtype), w_in.T)      # (k*D, k)
        resident = 2 * (k * d) * 128 * itemsize                     # w_bd double-buffer footprint
        if block_rows is not None:
            bn = max(8, min(rows, _round_up(block_rows, 8)))
            nb = pl.cdiv(rows, bn)
        else:
            bn, nb = _choose_block_rows(rows, k * d, itemsize, granule=8, resident_bytes=resident)

        out = pl.pallas_call(
            logreg_packed_kernel,
            out_shape=jax.ShapeDtypeStruct((rows, k), jnp.float32),
            grid_spec=pltpu.PrefetchScalarGridSpec(
                num_scalar_prefetch=0,
                grid=(nb,),
                in_specs=[
                    pl.BlockSpec((bn, k * d), lambda i: (i, 0)),          # stream x (lane-dense)
                    pl.BlockSpec((k * d, k), lambda i: (0, 0)),           # resident weight
                    pl.BlockSpec(memory_space=pltpu.MemorySpace.SMEM),    # bias scalar
                ],
                out_specs=pl.BlockSpec((bn, k), lambda i: (i, 0)),
            ),
            compiler_params=compiler_params,
        )(x_view, w_bd, b_in)
        return out.reshape(n, 1)

    # Fallback row-streaming path (any N / D). The trailing partial block overhangs and is
    # clipped at write-back; no jnp.pad round-trip of x.
    resident = 2 * 8 * max(_round_up(d, 128), 128) * itemsize        # w double-buffer footprint
    if block_rows is not None:
        bn = min(n, _round_up(block_rows, 128))
        nb = pl.cdiv(n, bn)
    else:
        bn, nb = _choose_block_rows(n, d, itemsize, granule=128, resident_bytes=resident)

    out = pl.pallas_call(
        logreg_rows_kernel,
        out_shape=jax.ShapeDtypeStruct((1, n), jnp.float32),
        grid_spec=pltpu.PrefetchScalarGridSpec(
            num_scalar_prefetch=0,
            grid=(nb,),
            in_specs=[
                pl.BlockSpec((bn, d), lambda i: (i, 0)),                  # stream x over batch
                pl.BlockSpec((1, d), lambda i: (0, 0)),                   # resident weight
                pl.BlockSpec(memory_space=pltpu.MemorySpace.SMEM),        # bias scalar
            ],
            out_specs=pl.BlockSpec((1, bn), lambda i: (0, i)),            # lane-dense output
        ),
        compiler_params=compiler_params,
    )(x, w_in, b_in)
    return out.reshape(n, 1)


# ----------------------------- demo / self-test -----------------------------

if __name__ == "__main__":
    key = jax.random.PRNGKey(0)
    kx1, kx3, kx4, kx5, kw, kb = jax.random.split(key, 6)

    input_dim = 32                                   # stands in for X_train.shape[1]
    bound = 1.0 / (input_dim ** 0.5)
    w = jax.random.uniform(kw, (1, input_dim), minval=-bound, maxval=bound, dtype=jnp.float32)
    b = jax.random.uniform(kb, (1,), minval=-bound, maxval=bound, dtype=jnp.float32)

    def reference(xx):
        # Same semantics as torch.sigmoid(self.linear(x))
        return jax.nn.sigmoid(xx @ w.T + b)

    # 1) Ragged batch (250 % 4 != 0) -> row-streaming path, single full-extent block.
    x1 = jax.random.normal(kx1, (250, input_dim), dtype=jnp.float32)
    o1 = jax.block_until_ready(logistic_regression(x1, w, b))
    assert o1.shape == (250, 1)
    assert jnp.allclose(o1, reference(x1), atol=1e-5, rtol=1e-5)

    # 2) Same input, forced multi-block grid with an overhanging (clipped) final block.
    o2 = jax.block_until_ready(logistic_regression(x1, w, b, block_rows=128))
    assert jnp.allclose(o2, reference(x1), atol=1e-5, rtol=1e-5)

    # 3) Batch divisible by the pack factor (k=4 for D=32) -> lane-dense packed path.
    x3 = jax.random.normal(kx3, (512, input_dim), dtype=jnp.float32)
    o3 = jax.block_until_ready(logistic_regression(x3, w, b))
    assert o3.shape == (512, 1)
    assert jnp.allclose(o3, reference(x3), atol=1e-5, rtol=1e-5)

    # 4) Packed path with a forced multi-block grid and a partial last block.
    x4 = jax.random.normal(kx4, (1000, input_dim), dtype=jnp.float32)
    o4 = jax.block_until_ready(logistic_regression(x4, w, b, block_rows=64))
    assert o4.shape == (1000, 1)
    assert jnp.allclose(o4, reference(x4), atol=1e-5, rtol=1e-5)

    # 5) Larger batch -> auto block chooser picks >=2 parallel blocks (v7x megacore path).
    x5 = jax.random.normal(kx5, (4096, input_dim), dtype=jnp.float32)
    o5 = jax.block_until_ready(logistic_regression(x5, w, b))
    assert o5.shape == (4096, 1)
    assert jnp.allclose(o5, reference(x5), atol=1e-5, rtol=1e-5)

    print("KERNEL_OK")
</pallas_src>

<mosaic_0001>
module attributes {stable_mosaic.version = 11 : i64} {
  func.func @logreg_rows_kernel(%arg0: i32, %arg1: memref<250x32xf32, #tpu.memory_space<vmem>>, %arg2: memref<1x32xf32, #tpu.memory_space<vmem>>, %arg3: memref<1x1xf32, #tpu.memory_space<smem>>, %arg4: memref<1x250xf32, #tpu.memory_space<vmem>>) attributes {dimension_semantics = [#tpu.dimension_semantics<parallel>], iteration_bounds = array<i64: 1>, scalar_prefetch = 0 : i64, scratch_operands = 0 : i64, tpu.core_type = #tpu.core_type<tc>, window_params = [{transform_indices = @transform_0, window_bounds = array<i64: 250, 32>}, {pipeline_mode = #tpu.pipeline_mode<synchronous>, transform_indices = @transform_1, window_bounds = array<i64: 1, 32>}, {transform_indices = @transform_2, window_bounds = array<i64: 1, 1>}, {transform_indices = @transform_3, window_bounds = array<i64: 1, 250>}]} {
    %c0 = arith.constant 0 : index
    %c0_0 = arith.constant 0 : index
    %0 = vector.load %arg2[%c0, %c0_0] : memref<1x32xf32, #tpu.memory_space<vmem>>, vector<1x32xf32>
    %c0_1 = arith.constant 0 : index
    %c0_2 = arith.constant 0 : index
    %1 = vector.load %arg1[%c0_1, %c0_2] : memref<250x32xf32, #tpu.memory_space<vmem>>, vector<250x32xf32>
    %cst = arith.constant dense<0.000000e+00> : vector<1x250xf32>
    %2 = tpu.matmul %0, %1, %cst {dimension_numbers = #tpu.dot_dimension_numbers<[1], [1], [0], [0], [0, 0, 1, 0], [], []>} : vector<1x32xf32>, vector<250x32xf32>, vector<1x250xf32> -> vector<1x250xf32>
    %c0_3 = arith.constant 0 : index
    %c0_4 = arith.constant 0 : index
    %3 = memref.load %arg3[%c0_3, %c0_4] : memref<1x1xf32, #tpu.memory_space<smem>>
    %4 = vector.broadcast %3 : f32 to vector<1x250xf32>
    %5 = arith.addf %2, %4 : vector<1x250xf32>
    %6 = arith.negf %5 : vector<1x250xf32>
    %7 = math.exp %6 : vector<1x250xf32>
    %cst_5 = arith.constant 1.000000e+00 : f32
    %8 = vector.broadcast %cst_5 : f32 to vector<1x250xf32>
    %9 = arith.addf %8, %7 : vector<1x250xf32>
    %10 = arith.divf %8, %9 : vector<1x250xf32>
    %c0_6 = arith.constant 0 : index
    %c0_7 = arith.constant 0 : index
    %11 = vector.load %arg4[%c0_6, %c0_7] : memref<1x250xf32, #tpu.memory_space<vmem>>, vector<1x250xf32>
    tpu.vector_store %arg4[%c0_6, %c0_7], %10 {strides = array<i32>} : memref<1x250xf32, #tpu.memory_space<vmem>>, vector<1x250xf32>,
    return
  }
  func.func @transform_0(%arg0: i32) -> (i32, i32) {
    %c0_i32 = arith.constant 0 : i32
    %c0_i32_0 = arith.constant 0 : i32
    return %arg0, %c0_i32 : i32, i32
  }
  func.func @transform_1(%arg0: i32) -> (i32, i32) {
    %c0_i32 = arith.constant 0 : i32
    %c0_i32_0 = arith.constant 0 : i32
    %c0_i32_1 = arith.constant 0 : i32
    return %c0_i32, %c0_i32_0 : i32, i32
  }
  func.func @transform_2(%arg0: i32) -> (i32, i32) {
    %c0_i32 = arith.constant 0 : i32
    %c0_i32_0 = arith.constant 0 : i32
    %c0_i32_1 = arith.constant 0 : i32
    return %c0_i32, %c0_i32_0 : i32, i32
  }
  func.func @transform_3(%arg0: i32) -> (i32, i32) {
    %c0_i32 = arith.constant 0 : i32
    %c0_i32_0 = arith.constant 0 : i32
    return %c0_i32, %arg0 : i32, i32
  }
}

</mosaic_0001>

<llo_original>
// kernel: logistic_regression.1
$region0: #{logistic_regression.1}
  #allocation0 [shape = 'u32[]', space=smem, size = 0x4, offset = 0x4, fixed_abs, tag = 'smem constant byte address 0x4 - core index']
  #allocation1 [shape = 'u32[144,128]{1,0:T(1,128)}', space=vmem, size = 0x12000, scoped, tag = 'internal scratch']
  #allocation2 [shape = 'f32[1,1]{1,0:T(1,128)S(6)}', space=smem, size = 0x200, scoped, tag = 'scoped memory for logistic_regression.1']
  %s0 = inlined_call_operand.vmem [shape: f32[250,32], index: 0, kind: input, shape index: {}]
  %s1 = inlined_call_operand.vmem [shape: f32[1,32], index: 1, kind: input, shape index: {}]
  %s2 = inlined_call_operand.<no memory space> [shape: f32[1,1], index: 2, kind: input, shape index: {}]
  %s3 = inlined_call_operand.hbm [shape: f32[1,250], index: 3, kind: output, shape index: {}]
  %s4 = sld [smem:[#allocation0]]
  $region22: #{logistic_regression.1} parent=0
    _
  %s6 = ssub.s32 1, %s4
  %s7 = scalar_select 0, %s6, %s4
  %8 = sst [smem:[#allocation2]] %s2
  $region1: #{logistic_regression.1} parent=0
    #allocation3 [shape = 'u8[1024]{0}', space=vmem, size = 0x400, scoped, tag = 'output window, operand 0, single buffered']
    #allocation4 [shape = 's32[1]{0}', space=sflag, size = 0x4, scoped, tag = 'scoped memory for logistic_regression.1']
    %9 = vsyncpa [#allocation4], 0
    // Predicated region
    $region2: #{logistic_regression.1} parent=1 // pred_check
      _
    $region3: #{logistic_regression.1} parent=1 // pred_check_branch
      %11 = sbr.rel (0) target = $region5
    $region4: #{logistic_regression.1} parent=1 // pred_region
      _
    $region5: #{logistic_regression.1} parent=1 // pred_fallthru
      _
    // Predicated region
    $region6: #{logistic_regression.1} parent=1 // pred_check
      _
    $region7: #{logistic_regression.1} parent=1 // pred_check_branch
      %13 = sbr.rel (0) target = $region9
    $region8: #{logistic_regression.1} parent=1 // pred_region
      _
    $region9: #{logistic_regression.1} parent=1 // pred_fallthru
      _
    // Predicated region
    $region10: #{logistic_regression.1} parent=1 // pred_check
      _
    $region11: #{logistic_regression.1} parent=1 // pred_check_branch
      %15 = sbr.rel (0) target = $region13
    $region12: #{logistic_regression.1} parent=1 // pred_region
      _
    $region13: #{logistic_regression.1} parent=1 // pred_fallthru
      _
    %v16 = vld [vmem:[%s1] sm:$0x1]
    %v17 = vld [vmem:[%s0] sm:$0xff]
    %v18 = vld [vmem:[%s0 + $0x8] sm:$0xff]
    %v19 = vld [vmem:[%s0 + $0x10] sm:$0xff]
    %v20 = vld [vmem:[%s0 + $0x18] sm:$0xff]
    %v21 = vld [vmem:[%s0 + $0x20] sm:$0xff]
    %v22 = vld [vmem:[%s0 + $0x28] sm:$0xff]
    %v23 = vld [vmem:[%s0 + $0x30] sm:$0xff]
    %v24 = vld [vmem:[%s0 + $0x38] sm:$0xff]
    %v25 = vld [vmem:[%s0 + $0x40] sm:$0xff]
    %v26 = vld [vmem:[%s0 + $0x48] sm:$0xff]
    %v27 = vld [vmem:[%s0 + $0x50] sm:$0xff]
    %v28 = vld [vmem:[%s0 + $0x58] sm:$0xff]
    %v29 = vld [vmem:[%s0 + $0x60] sm:$0xff]
    %v30 = vld [vmem:[%s0 + $0x68] sm:$0xff]
    %v31 = vld [vmem:[%s0 + $0x70] sm:$0xff]
    %v32 = vld [vmem:[%s0 + $0x78] sm:$0xff]
    %v33 = vld [vmem:[%s0 + $0x80] sm:$0xff]
    %v34 = vld [vmem:[%s0 + $0x88] sm:$0xff]
    %v35 = vld [vmem:[%s0 + $0x90] sm:$0xff]
    %v36 = vld [vmem:[%s0 + $0x98] sm:$0xff]
    %v37 = vld [vmem:[%s0 + $0xa0] sm:$0xff]
    %v38 = vld [vmem:[%s0 + $0xa8] sm:$0xff]
    %v39 = vld [vmem:[%s0 + $0xb0] sm:$0xff]
    %v40 = vld [vmem:[%s0 + $0xb8] sm:$0xff]
    %v41 = vld [vmem:[%s0 + $0xc0] sm:$0xff]
    %v42 = vld [vmem:[%s0 + $0xc8] sm:$0xff]
    %v43 = vld [vmem:[%s0 + $0xd0] sm:$0xff]
    %v44 = vld [vmem:[%s0 + $0xd8] sm:$0xff]
    %v45 = vld [vmem:[%s0 + $0xe0] sm:$0xff]
    %v46 = vld [vmem:[%s0 + $0xe8] sm:$0xff]
    %v47 = vld [vmem:[%s0 + $0xf0] sm:$0xff]
    %v48 = vld [vmem:[%s0 + $0xf8] sm:$0x3]
    %s49 = sld [smem:[#allocation2]]
    %v50 = vstv %s49
    %vm51 = vcmask 261120
    %v53 = vsel %vm51, %v16, 0
    %v56 = vsel %vm51, %v17, 0
    %v59 = vsel %vm51, %v18, 0
    %v62 = vsel %vm51, %v19, 0
    %v65 = vsel %vm51, %v20, 0
    %v68 = vsel %vm51, %v21, 0
    %v71 = vsel %vm51, %v22, 0
    %v74 = vsel %vm51, %v23, 0
    %v77 = vsel %vm51, %v24, 0
    %v80 = vsel %vm51, %v25, 0
    %v83 = vsel %vm51, %v26, 0
    %v86 = vsel %vm51, %v27, 0
    %v89 = vsel %vm51, %v28, 0
    %v92 = vsel %vm51, %v29, 0
    %v95 = vsel %vm51, %v30, 0
    %v98 = vsel %vm51, %v31, 0
    %v101 = vsel %vm51, %v32, 0
    %v104 = vsel %vm51, %v33, 0
    %v107 = vsel %vm51, %v34, 0
    %v110 = vsel %vm51, %v35, 0
    %v113 = vsel %vm51, %v36, 0
    %v116 = vsel %vm51, %v37, 0
    %v119 = vsel %vm51, %v38, 0
    %v122 = vsel %vm51, %v39, 0
    %v125 = vsel %vm51, %v40, 0
    %v128 = vsel %vm51, %v41, 0
    %v131 = vsel %vm51, %v42, 0
    %v134 = vsel %vm51, %v43, 0
    %v137 = vsel %vm51, %v44, 0
    %v140 = vsel %vm51, %v45, 0
    %v143 = vsel %vm51, %v46, 0
    %v146 = vsel %vm51, %v47, 0
    %v149 = vsel %vm51, %v48, 0
    %151 = vmatprep.subr.mxu0 0.0
    %152 = vmatpush1.xpose.msra.mxu0 %v56
    %153 = vmatprep.subr.mxu0 0.0
    %154 = vmatpush1.xpose.msra.mxu0 %v59
    %155 = vmatprep.subr.mxu0 0.0
    %156 = vmatpush1.xpose.msra.mxu0 %v62
    %157 = vmatprep.subr.mxu0 0.0
    %158 = vmatpush1.xpose.msra.mxu0 %v65
    %159 = vmatprep.subr.mxu0 0.0
    %160 = vmatpush1.xpose.msra.mxu0 %v68
    %161 = vmatprep.subr.mxu0 0.0
    %162 = vmatpush1.xpose.msra.mxu0 %v71
    %163 = vmatprep.subr.mxu0 0.0
    %164 = vmatpush1.xpose.msra.mxu0 %v74
    %165 = vmatprep.subr.mxu0 0.0
    %166 = vmatpush1.xpose.msra.mxu0 %v77
    %167 = vmatprep.subr.mxu0 0.0
    %168 = vmatpush1.xpose.msra.mxu0 %v80
    %169 = vmatprep.subr.mxu0 0.0
    %170 = vmatpush1.xpose.msra.mxu0 %v83
    %171 = vmatprep.subr.mxu0 0.0
    %172 = vmatpush1.xpose.msra.mxu0 %v86
    %173 = vmatprep.subr.mxu0 0.0
    %174 = vmatpush1.xpose.msra.mxu0 %v89
    %175 = vmatprep.subr.mxu0 0.0
    %176 = vmatpush1.xpose.msra.mxu0 %v92
    %177 = vmatprep.subr.mxu0 0.0
    %178 = vmatpush1.xpose.msra.mxu0 %v95
    %179 = vmatprep.subr.mxu0 0.0
    %180 = vmatpush1.xpose.msra.mxu0 %v98
    %181 = vmatprep.subr.mxu0 0.0
    %182 = vmatpush1.xpose.msra.mxu0 %v101
    %183 = vmatprep.subr.mxu0 0.0
    %184 = vmatpush1.xpose.msra.mxu0 %v104
    %185 = vmatprep.subr.mxu0 0.0
    %186 = vmatpush1.xpose.msra.mxu0 %v107
    %187 = vmatprep.subr.mxu0 0.0
    %188 = vmatpush1.xpose.msra.mxu0 %v110
    %189 = vmatprep.subr.mxu0 0.0
    %190 = vmatpush1.xpose.msra.mxu0 %v113
    %191 = vmatprep.subr.mxu0 0.0
    %192 = vmatpush1.xpose.msra.mxu0 %v116
    %193 = vmatprep.subr.mxu0 0.0
    %194 = vmatpush1.xpose.msra.mxu0 %v119
    %195 = vmatprep.subr.mxu0 0.0
    %196 = vmatpush1.xpose.msra.mxu0 %v122
    %197 = vmatprep.subr.mxu0 0.0
    %198 = vmatpush1.xpose.msra.mxu0 %v125
    %199 = vmatprep.subr.mxu0 0.0
    %200 = vmatpush1.xpose.msra.mxu0 %v128
    %201 = vmatprep.subr.mxu0 0.0
    %202 = vmatpush1.xpose.msra.mxu0 %v131
    %203 = vmatprep.subr.mxu0 0.0
    %204 = vmatpush1.xpose.msra.mxu0 %v134
    %205 = vmatprep.subr.mxu0 0.0
    %206 = vmatpush1.xpose.msra.mxu0 %v137
    %207 = vmatprep.subr.mxu0 0.0
    %208 = vmatpush1.xpose.msra.mxu0 %v140
    %209 = vmatprep.subr.mxu0 0.0
    %210 = vmatpush1.xpose.msra.mxu0 %v143
    %211 = vmatprep.subr.mxu0 0.0
    %212 = vmatpush1.xpose.msra.mxu0 %v146
    %213 = vmatprep.subr.mxu0 0.0
    %214 = vmatpush1.xpose.msra.mxu0 %v149
    %215 = vmatprep.mubr.f32.mxu0 0.0
    %216 = vmatmul.mubr.f32.gmra.mrb[0].mxu0 %v53
    %v217 = vpop.f32.mrb[0].mxu0
    %v218 = vadd.f32 %v50, %v217
    %v219 = vpop.f32.mrb[0].mxu0
    %v220 = vadd.f32 %v50, %v219
    %221 = vdwg.mxu0
    %v222 = vxor.u32 %v218, 2147483648
    %v223 = vxor.u32 %v220, 2147483648
    %v224 = vmul.f32 %v222, 1.442695
    %v225 = vpow.pop %v224
    %v226 = vmul.f32 %v223, 1.442695
    %v227 = vpow.pop %v226
    %v228 = vadd.f32 %v225, 1.0
    %v229 = vadd.f32 %v227, 1.0
    %v230 = vrcp.pop %v228
    %v231 = vmul.f32 1.0, %v230
    %v232 = vrcp.pop %v229
    %v233 = vmul.f32 1.0, %v232
    %v236 = vcombine.low %v231, %v233
    %v238 = vunpack.c.l.s4 1966171168
    %v239 = vunpack.c.0.s8 %v238
    %v240 = vlaneseq
    %v241 = vshrl.u32 %v240, 7
    %v242 = vsub.s32 %v239, %v241
    %v243 = vrot.slane %v236, %v242
    %v245 = vunpack.c.l.s4 1966171168
    %v246 = vunpack.c.0.s8 %v245
    %v247 = vlaneseq
    %v248 = vshrl.u32 %v247, 7
    %v249 = vsub.s32 %v246, %v248
    %v250 = vrot.slane %v243, %v249
    %v252 = vlaneseq
    %vm253 = vcmp.ge.s32.totalorder %v252, 0
    %vm254 = vcmp.lt.s32.totalorder %v252, 250
    %vm255 = vmand %vm253, %vm254
    %256 = vst.msk [vmem:[#allocation3] sm:$0x3] %vm255, %v250
    // Predicated region
    $region14: #{logistic_regression.1} parent=1 // pred_check
      _
    $region15: #{logistic_regression.1} parent=1 // pred_check_branch
      %258 = sbr.rel (0) target = $region17
    $region16: #{logistic_regression.1} parent=1 // pred_region
      %s260 = ssub.s32 32, 32
      %261 = vsyncadd [#allocation4], %s260
      %s263 = sshll.u32 [#allocation3], 4
      %s264 = int_to_ptr.vmem [resolvable:$true] %s263
      %266 = dma.vmem_to_hbm [thread:$0]  %s264, 32, %s3, [#allocation4]
    $region17: #{logistic_regression.1} parent=1 // pred_fallthru
      _
    // Predicated region
    $region18: #{logistic_regression.1} parent=1 // pred_check
      _
    $region19: #{logistic_regression.1} parent=1 // pred_check_branch
      %268 = sbr.rel (0) target = $region21
    $region20: #{logistic_regression.1} parent=1 // pred_region
      %269 = dma.done [#allocation4], 32
    $region21: #{logistic_regression.1} parent=1 // pred_fallthru
      _
    %270 = vsyncpa [#allocation4], 1

</llo_original>
